<compile_context>
chip_gen: v6e
topology: v6e:2x2x1
jax: 0.10.0
libtpu: 0.0.40
codegen_flags: <defaults>
</compile_context>

<pallas_src>
import functools

import jax
import jax.numpy as jnp
from jax.experimental import pallas as pl
from jax.experimental.pallas import tpu as pltpu

LANE = 128     # lane width: pad feature dims so stores are lane-dense
SUBLANE = 8    # f32 sublane count: pad batch so stores are fully unmasked


def rnn_step_kernel(tok_ref, tbl_hbm, wlin_ref, blin_ref, out_ref, hid_ref,
                    rows_ref, sems):
    """Fused (folded) embedding+RNN-cell pre-activation gather + tanh + linear.

    tok_ref  : (Bp,)    int32 token ids (SMEM)
    tbl_hbm  : (V, Hp)  f32 pre-activation table emb@W_ih^T + b, resident in HBM
    wlin_ref : (Hp, Op) bf16 W_lin^T (pre-transposed, padded, VMEM)
    blin_ref : (1, Op)  f32  b_lin (padded, VMEM)
    out_ref  : (Bp, Op) f32  linear output (lane+sublane dense)
    hid_ref  : (Bp, Hp) f32  new hidden state (lane+sublane dense)
    rows_ref : (Bp, Hp) f32  VMEM scratch for the gathered rows
    sems     : (Bp,)    DMA semaphores, one per gathered row
    """
    Bp = out_ref.shape[0]

    # Gather exactly the Bp needed pre-activation rows from HBM (512 B each,
    # aligned).  The full table never enters VMEM, so footprint/traffic are
    # independent of vocab size V.
    copies = [
        pltpu.make_async_copy(
            tbl_hbm.at[pl.ds(tok_ref[i], 1), :],
            rows_ref.at[pl.ds(i, 1), :],
            sems.at[i],
        )
        for i in range(Bp)  # static unroll, Bp == 8
    ]
    for c in copies:
        c.start()
    for c in copies:
        c.wait()

    # h1 = tanh(x @ W_ih^T + b_ih + 0 @ W_hh^T + b_hh): the matmul + bias were
    # folded into the gathered rows at init, so only the tanh (EUP) remains.
    h = jnp.tanh(rows_ref[...])                                   # (Bp, Hp) f32
    hid_ref[...] = h                                              # unmasked (8,128) store

    # output = h1 @ W_lin^T + b_lin  — the single remaining MXU op.
    out = jnp.dot(h.astype(wlin_ref.dtype), wlin_ref[...],
                  preferred_element_type=jnp.float32) + blin_ref[...]
    out_ref[...] = out                                            # unmasked (8,128) store


def rnn_forward(tokens, hidden_unused, kp, *, hidden_size, output_size):
    """Mirror RNN.forward. `hidden_unused` is ignored (the PyTorch code sets
    hidden = None before the RNN call, so h0 is always zeros)."""
    del hidden_unused
    B = tokens.shape[0]
    V, Hp = kp["pre_tbl"].shape
    Op = kp["w_lin_t"].shape[1]
    Bp = max(SUBLANE, ((B + SUBLANE - 1) // SUBLANE) * SUBLANE)

    # Clamp ids so the row DMA is always in-bounds (PyTorch would raise on OOB).
    tok = jnp.clip(tokens.astype(jnp.int32), 0, V - 1)
    tok_pad = jnp.zeros((Bp,), jnp.int32).at[:B].set(tok)

    # Honest post-fold cost: only B gathered rows + W_lin, one matmul, one tanh.
    cost = pl.CostEstimate(
        flops=2 * Bp * Hp * Op,
        transcendentals=Bp * Hp,
        bytes_accessed=(Bp * 4                     # token ids (SMEM)
                        + Bp * Hp * 4              # gathered pre-activation rows
                        + Hp * Op * 2 + Op * 4     # W_lin^T (bf16) + b_lin (f32)
                        + Bp * (Hp + Op) * 4),     # outputs
    )

    out_pad, hid_pad = pl.pallas_call(
        rnn_step_kernel,
        out_shape=(
            jax.ShapeDtypeStruct((Bp, Op), jnp.float32),
            jax.ShapeDtypeStruct((Bp, Hp), jnp.float32),
        ),
        in_specs=[
            pl.BlockSpec(memory_space=pltpu.MemorySpace.SMEM),   # token ids
            pl.BlockSpec(memory_space=pl.ANY),                   # pre-act table stays in HBM
            pl.BlockSpec(memory_space=pltpu.MemorySpace.VMEM),   # W_lin^T
            pl.BlockSpec(memory_space=pltpu.MemorySpace.VMEM),   # b_lin
        ],
        out_specs=(
            pl.BlockSpec(memory_space=pltpu.MemorySpace.VMEM),
            pl.BlockSpec(memory_space=pltpu.MemorySpace.VMEM),
        ),
        scratch_shapes=[
            pltpu.VMEM((Bp, Hp), jnp.float32),       # gathered rows
            pltpu.SemaphoreType.DMA((Bp,)),          # one DMA sem per row
        ],
        cost_estimate=cost,
    )(tok_pad, kp["pre_tbl"], kp["w_lin_t"], kp["b_lin"])

    output = out_pad[:B, :output_size]                            # (B, O)
    hidden = hid_pad[:B, :hidden_size].reshape(1, B, hidden_size)
    return output, hidden


def init_params(key, input_size, hidden_size, output_size):
    """f32 master weights, torch-like init."""
    ks = jax.random.split(key, 7)
    H, O, V = hidden_size, output_size, input_size
    b = 1.0 / jnp.sqrt(H)
    return {
        "embedding": jax.random.normal(ks[0], (V, H), jnp.float32),
        "w_ih": jax.random.uniform(ks[1], (H, H), jnp.float32, -b, b),
        "w_hh": jax.random.uniform(ks[2], (H, H), jnp.float32, -b, b),  # unused: h0 == 0
        "b_ih": jax.random.uniform(ks[3], (H,), jnp.float32, -b, b),
        "b_hh": jax.random.uniform(ks[4], (H,), jnp.float32, -b, b),
        "w_lin": jax.random.uniform(ks[5], (O, H), jnp.float32, -b, b),
        "b_lin": jax.random.uniform(ks[6], (O,), jnp.float32, -b, b),
    }


def prepare_kernel_params(params, hidden_size, output_size):
    """One-time prep: fold emb @ W_ih^T + (b_ih+b_hh) into a per-token table,
    pre-transpose/pad/cast W_lin, pad biases.  Exact w.r.t. the per-call path
    because the embedding lookup is a row selection and h0 == 0 (so the
    h0 @ W_hh^T term is identically zero)."""
    H, O = hidden_size, output_size
    Hp = -(-H // LANE) * LANE
    Op = -(-O // LANE) * LANE
    V = params["embedding"].shape[0]

    def pad2(a, rows, cols):
        return jnp.zeros((rows, cols), a.dtype).at[: a.shape[0], : a.shape[1]].set(a)

    emb_bf = params["embedding"].astype(jnp.bfloat16)
    wih_bf = params["w_ih"].astype(jnp.bfloat16)
    bias = (params["b_ih"] + params["b_hh"]).astype(jnp.float32)
    pre = jnp.dot(emb_bf, wih_bf.T, preferred_element_type=jnp.float32) + bias  # (V, H) f32

    return {
        "pre_tbl": pad2(pre, V, Hp),                                      # (V, Hp)  f32 (HBM)
        "w_lin_t": pad2(params["w_lin"].T, Hp, Op).astype(jnp.bfloat16),  # (Hp, Op) bf16
        "b_lin": pad2(params["b_lin"].reshape(1, O), 1, Op),              # (1, Op)  f32
    }


if __name__ == "__main__":
    # input_size must equal hidden_size for the (faithfully reproduced) module to run.
    input_size = 32
    hidden_size = 32
    output_size = 8
    n_layers = 1
    batch = 2

    key = jax.random.PRNGKey(0)
    pkey, tkey = jax.random.split(key)
    params = init_params(pkey, input_size, hidden_size, output_size)
    kparams = prepare_kernel_params(params, hidden_size, output_size)

    tokens = jax.random.randint(tkey, (batch,), 0, input_size, dtype=jnp.int32)
    # init_hidden equivalent (ignored inside forward, as in the PyTorch code):
    hidden0 = jnp.zeros((n_layers, batch, hidden_size), jnp.float32)

    fwd = jax.jit(functools.partial(
        rnn_forward, hidden_size=hidden_size, output_size=output_size))
    out, hidden = fwd(tokens, hidden0, kparams)
    jax.block_until_ready((out, hidden))

    # Pure-JAX reference on the same folded/rounded parameters.
    pre_ref = kparams["pre_tbl"][tokens]                        # (B, Hp) f32
    h_ref = jnp.tanh(pre_ref)
    wlin_f = kparams["w_lin_t"].astype(jnp.float32)
    out_full = (h_ref.astype(jnp.bfloat16).astype(jnp.float32) @ wlin_f
                + kparams["b_lin"][0])
    out_ref = out_full[:, :output_size]
    hid_ref = h_ref[:, :hidden_size]

    assert out.shape == (batch, output_size)
    assert hidden.shape == (n_layers, batch, hidden_size)
    assert jnp.allclose(out, out_ref, atol=2e-3), float(jnp.max(jnp.abs(out - out_ref)))
    assert jnp.allclose(hidden[0], hid_ref, atol=1e-3)

    # TODO(synk): if this forward is ever called per-token in a decode loop, move
    # the time loop into the kernel (grid=(T,) 'arbitrary', weights resident with
    # constant index_map, hidden in VMEM scratch, and W_hh reintroduced for t>0).
    print("KERNEL_OK")
</pallas_src>

<mosaic_0001>
module attributes {stable_mosaic.version = 11 : i64} {
  func.func @rnn_step_kernel(%arg0: memref<8xi32, #tpu.memory_space<smem>>, %arg1: memref<32x128xf32, #tpu.memory_space<any>>, %arg2: memref<128x128xbf16, #tpu.memory_space<vmem>>, %arg3: memref<1x128xf32, #tpu.memory_space<vmem>>, %arg4: memref<8x128xf32, #tpu.memory_space<vmem>>, %arg5: memref<8x128xf32, #tpu.memory_space<vmem>>, %arg6: memref<8x128xf32, #tpu.memory_space<vmem>>, %arg7: memref<8x!tpu.dma_semaphore, #tpu.memory_space<semaphore_mem>>) attributes {dimension_semantics = [], scalar_prefetch = 0 : i64, scratch_operands = 2 : i64, tpu.core_type = #tpu.core_type<tc>} {
    %c0 = arith.constant 0 : index
    %0 = memref.load %arg0[%c0] : memref<8xi32, #tpu.memory_space<smem>>
    %c1 = arith.constant 1 : index
    %1 = memref.load %arg0[%c1] : memref<8xi32, #tpu.memory_space<smem>>
    %c2 = arith.constant 2 : index
    %2 = memref.load %arg0[%c2] : memref<8xi32, #tpu.memory_space<smem>>
    %c3 = arith.constant 3 : index
    %3 = memref.load %arg0[%c3] : memref<8xi32, #tpu.memory_space<smem>>
    %c4 = arith.constant 4 : index
    %4 = memref.load %arg0[%c4] : memref<8xi32, #tpu.memory_space<smem>>
    %c5 = arith.constant 5 : index
    %5 = memref.load %arg0[%c5] : memref<8xi32, #tpu.memory_space<smem>>
    %c6 = arith.constant 6 : index
    %6 = memref.load %arg0[%c6] : memref<8xi32, #tpu.memory_space<smem>>
    %c7 = arith.constant 7 : index
    %7 = memref.load %arg0[%c7] : memref<8xi32, #tpu.memory_space<smem>>
    %c0_i32 = arith.constant 0 : i32
    %c0_i32_0 = arith.constant 0 : i32
    %8 = tpu.memref_slice %arg1[%0, %c0_i32_0] : memref<32x128xf32, #tpu.memory_space<any>> -> memref<1x128xf32, #tpu.memory_space<any>>
    %c0_i32_1 = arith.constant 0 : i32
    %c0_i32_2 = arith.constant 0 : i32
    %9 = tpu.memref_slice %arg6[%c0_i32_1, %c0_i32_2] : memref<8x128xf32, #tpu.memory_space<vmem>> -> memref<1x128xf32, #tpu.memory_space<vmem>>
    %10 = tpu.memref_slice %arg7[%c0_i32] : memref<8x!tpu.dma_semaphore, #tpu.memory_space<semaphore_mem>> -> memref<1x!tpu.dma_semaphore, #tpu.memory_space<semaphore_mem>>
    %11 = tpu.memref_squeeze %10 : memref<1x!tpu.dma_semaphore, #tpu.memory_space<semaphore_mem>> -> memref<!tpu.dma_semaphore, #tpu.memory_space<semaphore_mem>>
    tpu.enqueue_dma source(%8 : memref<1x128xf32, #tpu.memory_space<any>>) target(%9 : memref<1x128xf32, #tpu.memory_space<vmem>>) target_semaphore(%11 : memref<!tpu.dma_semaphore, #tpu.memory_space<semaphore_mem>>)
    %c1_i32 = arith.constant 1 : i32
    %c0_i32_3 = arith.constant 0 : i32
    %12 = tpu.memref_slice %arg1[%1, %c0_i32_3] : memref<32x128xf32, #tpu.memory_space<any>> -> memref<1x128xf32, #tpu.memory_space<any>>
    %c1_i32_4 = arith.constant 1 : i32
    %c0_i32_5 = arith.constant 0 : i32
    %13 = tpu.memref_slice %arg6[%c1_i32_4, %c0_i32_5] : memref<8x128xf32, #tpu.memory_space<vmem>> -> memref<1x128xf32, #tpu.memory_space<vmem>>
    %14 = tpu.memref_slice %arg7[%c1_i32] : memref<8x!tpu.dma_semaphore, #tpu.memory_space<semaphore_mem>> -> memref<1x!tpu.dma_semaphore, #tpu.memory_space<semaphore_mem>>
    %15 = tpu.memref_squeeze %14 : memref<1x!tpu.dma_semaphore, #tpu.memory_space<semaphore_mem>> -> memref<!tpu.dma_semaphore, #tpu.memory_space<semaphore_mem>>
    tpu.enqueue_dma source(%12 : memref<1x128xf32, #tpu.memory_space<any>>) target(%13 : memref<1x128xf32, #tpu.memory_space<vmem>>) target_semaphore(%15 : memref<!tpu.dma_semaphore, #tpu.memory_space<semaphore_mem>>)
    %c2_i32 = arith.constant 2 : i32
    %c0_i32_6 = arith.constant 0 : i32
    %16 = tpu.memref_slice %arg1[%2, %c0_i32_6] : memref<32x128xf32, #tpu.memory_space<any>> -> memref<1x128xf32, #tpu.memory_space<any>>
    %c2_i32_7 = arith.constant 2 : i32
    %c0_i32_8 = arith.constant 0 : i32
    %17 = tpu.memref_slice %arg6[%c2_i32_7, %c0_i32_8] : memref<8x128xf32, #tpu.memory_space<vmem>> -> memref<1x128xf32, #tpu.memory_space<vmem>>
    %18 = tpu.memref_slice %arg7[%c2_i32] : memref<8x!tpu.dma_semaphore, #tpu.memory_space<semaphore_mem>> -> memref<1x!tpu.dma_semaphore, #tpu.memory_space<semaphore_mem>>
    %19 = tpu.memref_squeeze %18 : memref<1x!tpu.dma_semaphore, #tpu.memory_space<semaphore_mem>> -> memref<!tpu.dma_semaphore, #tpu.memory_space<semaphore_mem>>
    tpu.enqueue_dma source(%16 : memref<1x128xf32, #tpu.memory_space<any>>) target(%17 : memref<1x128xf32, #tpu.memory_space<vmem>>) target_semaphore(%19 : memref<!tpu.dma_semaphore, #tpu.memory_space<semaphore_mem>>)
    %c3_i32 = arith.constant 3 : i32
    %c0_i32_9 = arith.constant 0 : i32
    %20 = tpu.memref_slice %arg1[%3, %c0_i32_9] : memref<32x128xf32, #tpu.memory_space<any>> -> memref<1x128xf32, #tpu.memory_space<any>>
    %c3_i32_10 = arith.constant 3 : i32
    %c0_i32_11 = arith.constant 0 : i32
    %21 = tpu.memref_slice %arg6[%c3_i32_10, %c0_i32_11] : memref<8x128xf32, #tpu.memory_space<vmem>> -> memref<1x128xf32, #tpu.memory_space<vmem>>
    %22 = tpu.memref_slice %arg7[%c3_i32] : memref<8x!tpu.dma_semaphore, #tpu.memory_space<semaphore_mem>> -> memref<1x!tpu.dma_semaphore, #tpu.memory_space<semaphore_mem>>
    %23 = tpu.memref_squeeze %22 : memref<1x!tpu.dma_semaphore, #tpu.memory_space<semaphore_mem>> -> memref<!tpu.dma_semaphore, #tpu.memory_space<semaphore_mem>>
    tpu.enqueue_dma source(%20 : memref<1x128xf32, #tpu.memory_space<any>>) target(%21 : memref<1x128xf32, #tpu.memory_space<vmem>>) target_semaphore(%23 : memref<!tpu.dma_semaphore, #tpu.memory_space<semaphore_mem>>)
    %c4_i32 = arith.constant 4 : i32
    %c0_i32_12 = arith.constant 0 : i32
    %24 = tpu.memref_slice %arg1[%4, %c0_i32_12] : memref<32x128xf32, #tpu.memory_space<any>> -> memref<1x128xf32, #tpu.memory_space<any>>
    %c4_i32_13 = arith.constant 4 : i32
    %c0_i32_14 = arith.constant 0 : i32
    %25 = tpu.memref_slice %arg6[%c4_i32_13, %c0_i32_14] : memref<8x128xf32, #tpu.memory_space<vmem>> -> memref<1x128xf32, #tpu.memory_space<vmem>>
    %26 = tpu.memref_slice %arg7[%c4_i32] : memref<8x!tpu.dma_semaphore, #tpu.memory_space<semaphore_mem>> -> memref<1x!tpu.dma_semaphore, #tpu.memory_space<semaphore_mem>>
    %27 = tpu.memref_squeeze %26 : memref<1x!tpu.dma_semaphore, #tpu.memory_space<semaphore_mem>> -> memref<!tpu.dma_semaphore, #tpu.memory_space<semaphore_mem>>
    tpu.enqueue_dma source(%24 : memref<1x128xf32, #tpu.memory_space<any>>) target(%25 : memref<1x128xf32, #tpu.memory_space<vmem>>) target_semaphore(%27 : memref<!tpu.dma_semaphore, #tpu.memory_space<semaphore_mem>>)
    %c5_i32 = arith.constant 5 : i32
    %c0_i32_15 = arith.constant 0 : i32
    %28 = tpu.memref_slice %arg1[%5, %c0_i32_15] : memref<32x128xf32, #tpu.memory_space<any>> -> memref<1x128xf32, #tpu.memory_space<any>>
    %c5_i32_16 = arith.constant 5 : i32
    %c0_i32_17 = arith.constant 0 : i32
    %29 = tpu.memref_slice %arg6[%c5_i32_16, %c0_i32_17] : memref<8x128xf32, #tpu.memory_space<vmem>> -> memref<1x128xf32, #tpu.memory_space<vmem>>
    %30 = tpu.memref_slice %arg7[%c5_i32] : memref<8x!tpu.dma_semaphore, #tpu.memory_space<semaphore_mem>> -> memref<1x!tpu.dma_semaphore, #tpu.memory_space<semaphore_mem>>
    %31 = tpu.memref_squeeze %30 : memref<1x!tpu.dma_semaphore, #tpu.memory_space<semaphore_mem>> -> memref<!tpu.dma_semaphore, #tpu.memory_space<semaphore_mem>>
    tpu.enqueue_dma source(%28 : memref<1x128xf32, #tpu.memory_space<any>>) target(%29 : memref<1x128xf32, #tpu.memory_space<vmem>>) target_semaphore(%31 : memref<!tpu.dma_semaphore, #tpu.memory_space<semaphore_mem>>)
    %c6_i32 = arith.constant 6 : i32
    %c0_i32_18 = arith.constant 0 : i32
    %32 = tpu.memref_slice %arg1[%6, %c0_i32_18] : memref<32x128xf32, #tpu.memory_space<any>> -> memref<1x128xf32, #tpu.memory_space<any>>
    %c6_i32_19 = arith.constant 6 : i32
    %c0_i32_20 = arith.constant 0 : i32
    %33 = tpu.memref_slice %arg6[%c6_i32_19, %c0_i32_20] : memref<8x128xf32, #tpu.memory_space<vmem>> -> memref<1x128xf32, #tpu.memory_space<vmem>>
    %34 = tpu.memref_slice %arg7[%c6_i32] : memref<8x!tpu.dma_semaphore, #tpu.memory_space<semaphore_mem>> -> memref<1x!tpu.dma_semaphore, #tpu.memory_space<semaphore_mem>>
    %35 = tpu.memref_squeeze %34 : memref<1x!tpu.dma_semaphore, #tpu.memory_space<semaphore_mem>> -> memref<!tpu.dma_semaphore, #tpu.memory_space<semaphore_mem>>
    tpu.enqueue_dma source(%32 : memref<1x128xf32, #tpu.memory_space<any>>) target(%33 : memref<1x128xf32, #tpu.memory_space<vmem>>) target_semaphore(%35 : memref<!tpu.dma_semaphore, #tpu.memory_space<semaphore_mem>>)
    %c7_i32 = arith.constant 7 : i32
    %c0_i32_21 = arith.constant 0 : i32
    %36 = tpu.memref_slice %arg1[%7, %c0_i32_21] : memref<32x128xf32, #tpu.memory_space<any>> -> memref<1x128xf32, #tpu.memory_space<any>>
    %c7_i32_22 = arith.constant 7 : i32
    %c0_i32_23 = arith.constant 0 : i32
    %37 = tpu.memref_slice %arg6[%c7_i32_22, %c0_i32_23] : memref<8x128xf32, #tpu.memory_space<vmem>> -> memref<1x128xf32, #tpu.memory_space<vmem>>
    %38 = tpu.memref_slice %arg7[%c7_i32] : memref<8x!tpu.dma_semaphore, #tpu.memory_space<semaphore_mem>> -> memref<1x!tpu.dma_semaphore, #tpu.memory_space<semaphore_mem>>
    %39 = tpu.memref_squeeze %38 : memref<1x!tpu.dma_semaphore, #tpu.memory_space<semaphore_mem>> -> memref<!tpu.dma_semaphore, #tpu.memory_space<semaphore_mem>>
    tpu.enqueue_dma source(%36 : memref<1x128xf32, #tpu.memory_space<any>>) target(%37 : memref<1x128xf32, #tpu.memory_space<vmem>>) target_semaphore(%39 : memref<!tpu.dma_semaphore, #tpu.memory_space<semaphore_mem>>)
    %c0_i32_24 = arith.constant 0 : i32
    %c0_i32_25 = arith.constant 0 : i32
    %40 = tpu.memref_slice %arg1[%0, %c0_i32_25] : memref<32x128xf32, #tpu.memory_space<any>> -> memref<1x128xf32, #tpu.memory_space<any>>
    %c0_i32_26 = arith.constant 0 : i32
    %c0_i32_27 = arith.constant 0 : i32
    %41 = tpu.memref_slice %arg6[%c0_i32_26, %c0_i32_27] : memref<8x128xf32, #tpu.memory_space<vmem>> -> memref<1x128xf32, #tpu.memory_space<vmem>>
    %42 = tpu.memref_slice %arg7[%c0_i32_24] : memref<8x!tpu.dma_semaphore, #tpu.memory_space<semaphore_mem>> -> memref<1x!tpu.dma_semaphore, #tpu.memory_space<semaphore_mem>>
    %43 = tpu.memref_squeeze %42 : memref<1x!tpu.dma_semaphore, #tpu.memory_space<semaphore_mem>> -> memref<!tpu.dma_semaphore, #tpu.memory_space<semaphore_mem>>
    tpu.wait_dma2 semaphore(%43 : memref<!tpu.dma_semaphore, #tpu.memory_space<semaphore_mem>>) src(%40 : memref<1x128xf32, #tpu.memory_space<any>>) dst(%41 : memref<1x128xf32, #tpu.memory_space<vmem>>)
    %c1_i32_28 = arith.constant 1 : i32
    %c0_i32_29 = arith.constant 0 : i32
    %44 = tpu.memref_slice %arg1[%1, %c0_i32_29] : memref<32x128xf32, #tpu.memory_space<any>> -> memref<1x128xf32, #tpu.memory_space<any>>
    %c1_i32_30 = arith.constant 1 : i32
    %c0_i32_31 = arith.constant 0 : i32
    %45 = tpu.memref_slice %arg6[%c1_i32_30, %c0_i32_31] : memref<8x128xf32, #tpu.memory_space<vmem>> -> memref<1x128xf32, #tpu.memory_space<vmem>>
    %46 = tpu.memref_slice %arg7[%c1_i32_28] : memref<8x!tpu.dma_semaphore, #tpu.memory_space<semaphore_mem>> -> memref<1x!tpu.dma_semaphore, #tpu.memory_space<semaphore_mem>>
    %47 = tpu.memref_squeeze %46 : memref<1x!tpu.dma_semaphore, #tpu.memory_space<semaphore_mem>> -> memref<!tpu.dma_semaphore, #tpu.memory_space<semaphore_mem>>
    tpu.wait_dma2 semaphore(%47 : memref<!tpu.dma_semaphore, #tpu.memory_space<semaphore_mem>>) src(%44 : memref<1x128xf32, #tpu.memory_space<any>>) dst(%45 : memref<1x128xf32, #tpu.memory_space<vmem>>)
    %c2_i32_32 = arith.constant 2 : i32
    %c0_i32_33 = arith.constant 0 : i32
    %48 = tpu.memref_slice %arg1[%2, %c0_i32_33] : memref<32x128xf32, #tpu.memory_space<any>> -> memref<1x128xf32, #tpu.memory_space<any>>
    %c2_i32_34 = arith.constant 2 : i32
    %c0_i32_35 = arith.constant 0 : i32
    %49 = tpu.memref_slice %arg6[%c2_i32_34, %c0_i32_35] : memref<8x128xf32, #tpu.memory_space<vmem>> -> memref<1x128xf32, #tpu.memory_space<vmem>>
    %50 = tpu.memref_slice %arg7[%c2_i32_32] : memref<8x!tpu.dma_semaphore, #tpu.memory_space<semaphore_mem>> -> memref<1x!tpu.dma_semaphore, #tpu.memory_space<semaphore_mem>>
    %51 = tpu.memref_squeeze %50 : memref<1x!tpu.dma_semaphore, #tpu.memory_space<semaphore_mem>> -> memref<!tpu.dma_semaphore, #tpu.memory_space<semaphore_mem>>
    tpu.wait_dma2 semaphore(%51 : memref<!tpu.dma_semaphore, #tpu.memory_space<semaphore_mem>>) src(%48 : memref<1x128xf32, #tpu.memory_space<any>>) dst(%49 : memref<1x128xf32, #tpu.memory_space<vmem>>)
    %c3_i32_36 = arith.constant 3 : i32
    %c0_i32_37 = arith.constant 0 : i32
    %52 = tpu.memref_slice %arg1[%3, %c0_i32_37] : memref<32x128xf32, #tpu.memory_space<any>> -> memref<1x128xf32, #tpu.memory_space<any>>
    %c3_i32_38 = arith.constant 3 : i32
    %c0_i32_39 = arith.constant 0 : i32
    %53 = tpu.memref_slice %arg6[%c3_i32_38, %c0_i32_39] : memref<8x128xf32, #tpu.memory_space<vmem>> -> memref<1x128xf32, #tpu.memory_space<vmem>>
    %54 = tpu.memref_slice %arg7[%c3_i32_36] : memref<8x!tpu.dma_semaphore, #tpu.memory_space<semaphore_mem>> -> memref<1x!tpu.dma_semaphore, #tpu.memory_space<semaphore_mem>>
    %55 = tpu.memref_squeeze %54 : memref<1x!tpu.dma_semaphore, #tpu.memory_space<semaphore_mem>> -> memref<!tpu.dma_semaphore, #tpu.memory_space<semaphore_mem>>
    tpu.wait_dma2 semaphore(%55 : memref<!tpu.dma_semaphore, #tpu.memory_space<semaphore_mem>>) src(%52 : memref<1x128xf32, #tpu.memory_space<any>>) dst(%53 : memref<1x128xf32, #tpu.memory_space<vmem>>)
    %c4_i32_40 = arith.constant 4 : i32
    %c0_i32_41 = arith.constant 0 : i32
    %56 = tpu.memref_slice %arg1[%4, %c0_i32_41] : memref<32x128xf32, #tpu.memory_space<any>> -> memref<1x128xf32, #tpu.memory_space<any>>
    %c4_i32_42 = arith.constant 4 : i32
    %c0_i32_43 = arith.constant 0 : i32
    %57 = tpu.memref_slice %arg6[%c4_i32_42, %c0_i32_43] : memref<8x128xf32, #tpu.memory_space<vmem>> -> memref<1x128xf32, #tpu.memory_space<vmem>>
    %58 = tpu.memref_slice %arg7[%c4_i32_40] : memref<8x!tpu.dma_semaphore, #tpu.memory_space<semaphore_mem>> -> memref<1x!tpu.dma_semaphore, #tpu.memory_space<semaphore_mem>>
    %59 = tpu.memref_squeeze %58 : memref<1x!tpu.dma_semaphore, #tpu.memory_space<semaphore_mem>> -> memref<!tpu.dma_semaphore, #tpu.memory_space<semaphore_mem>>
    tpu.wait_dma2 semaphore(%59 : memref<!tpu.dma_semaphore, #tpu.memory_space<semaphore_mem>>) src(%56 : memref<1x128xf32, #tpu.memory_space<any>>) dst(%57 : memref<1x128xf32, #tpu.memory_space<vmem>>)
    %c5_i32_44 = arith.constant 5 : i32
    %c0_i32_45 = arith.constant 0 : i32
    %60 = tpu.memref_slice %arg1[%5, %c0_i32_45] : memref<32x128xf32, #tpu.memory_space<any>> -> memref<1x128xf32, #tpu.memory_space<any>>
    %c5_i32_46 = arith.constant 5 : i32
    %c0_i32_47 = arith.constant 0 : i32
    %61 = tpu.memref_slice %arg6[%c5_i32_46, %c0_i32_47] : memref<8x128xf32, #tpu.memory_space<vmem>> -> memref<1x128xf32, #tpu.memory_space<vmem>>
    %62 = tpu.memref_slice %arg7[%c5_i32_44] : memref<8x!tpu.dma_semaphore, #tpu.memory_space<semaphore_mem>> -> memref<1x!tpu.dma_semaphore, #tpu.memory_space<semaphore_mem>>
    %63 = tpu.memref_squeeze %62 : memref<1x!tpu.dma_semaphore, #tpu.memory_space<semaphore_mem>> -> memref<!tpu.dma_semaphore, #tpu.memory_space<semaphore_mem>>
    tpu.wait_dma2 semaphore(%63 : memref<!tpu.dma_semaphore, #tpu.memory_space<semaphore_mem>>) src(%60 : memref<1x128xf32, #tpu.memory_space<any>>) dst(%61 : memref<1x128xf32, #tpu.memory_space<vmem>>)
    %c6_i32_48 = arith.constant 6 : i32
    %c0_i32_49 = arith.constant 0 : i32
    %64 = tpu.memref_slice %arg1[%6, %c0_i32_49] : memref<32x128xf32, #tpu.memory_space<any>> -> memref<1x128xf32, #tpu.memory_space<any>>
    %c6_i32_50 = arith.constant 6 : i32
    %c0_i32_51 = arith.constant 0 : i32
    %65 = tpu.memref_slice %arg6[%c6_i32_50, %c0_i32_51] : memref<8x128xf32, #tpu.memory_space<vmem>> -> memref<1x128xf32, #tpu.memory_space<vmem>>
    %66 = tpu.memref_slice %arg7[%c6_i32_48] : memref<8x!tpu.dma_semaphore, #tpu.memory_space<semaphore_mem>> -> memref<1x!tpu.dma_semaphore, #tpu.memory_space<semaphore_mem>>
    %67 = tpu.memref_squeeze %66 : memref<1x!tpu.dma_semaphore, #tpu.memory_space<semaphore_mem>> -> memref<!tpu.dma_semaphore, #tpu.memory_space<semaphore_mem>>
    tpu.wait_dma2 semaphore(%67 : memref<!tpu.dma_semaphore, #tpu.memory_space<semaphore_mem>>) src(%64 : memref<1x128xf32, #tpu.memory_space<any>>) dst(%65 : memref<1x128xf32, #tpu.memory_space<vmem>>)
    %c7_i32_52 = arith.constant 7 : i32
    %c0_i32_53 = arith.constant 0 : i32
    %68 = tpu.memref_slice %arg1[%7, %c0_i32_53] : memref<32x128xf32, #tpu.memory_space<any>> -> memref<1x128xf32, #tpu.memory_space<any>>
    %c7_i32_54 = arith.constant 7 : i32
    %c0_i32_55 = arith.constant 0 : i32
    %69 = tpu.memref_slice %arg6[%c7_i32_54, %c0_i32_55] : memref<8x128xf32, #tpu.memory_space<vmem>> -> memref<1x128xf32, #tpu.memory_space<vmem>>
    %70 = tpu.memref_slice %arg7[%c7_i32_52] : memref<8x!tpu.dma_semaphore, #tpu.memory_space<semaphore_mem>> -> memref<1x!tpu.dma_semaphore, #tpu.memory_space<semaphore_mem>>
    %71 = tpu.memref_squeeze %70 : memref<1x!tpu.dma_semaphore, #tpu.memory_space<semaphore_mem>> -> memref<!tpu.dma_semaphore, #tpu.memory_space<semaphore_mem>>
    tpu.wait_dma2 semaphore(%71 : memref<!tpu.dma_semaphore, #tpu.memory_space<semaphore_mem>>) src(%68 : memref<1x128xf32, #tpu.memory_space<any>>) dst(%69 : memref<1x128xf32, #tpu.memory_space<vmem>>)
    %c0_56 = arith.constant 0 : index
    %c0_57 = arith.constant 0 : index
    %72 = vector.load %arg6[%c0_56, %c0_57] : memref<8x128xf32, #tpu.memory_space<vmem>>, vector<8x128xf32>
    %73 = math.tanh %72 : vector<8x128xf32>
    %c0_58 = arith.constant 0 : index
    %c0_59 = arith.constant 0 : index
    %74 = vector.load %arg5[%c0_58, %c0_59] : memref<8x128xf32, #tpu.memory_space<vmem>>, vector<8x128xf32>
    tpu.vector_store %arg5[%c0_58, %c0_59], %73 {strides = array<i32>} : memref<8x128xf32, #tpu.memory_space<vmem>>, vector<8x128xf32>,
    %75 = arith.truncf %73 : vector<8x128xf32> to vector<8x128xbf16>
    %c0_60 = arith.constant 0 : index
    %c0_61 = arith.constant 0 : index
    %76 = vector.load %arg2[%c0_60, %c0_61] : memref<128x128xbf16, #tpu.memory_space<vmem>>, vector<128x128xbf16>
    %cst = arith.constant dense<0.000000e+00> : vector<8x128xf32>
    %77 = tpu.matmul %75, %76, %cst {dimension_numbers = #tpu.dot_dimension_numbers<[1], [0], [0], [1], [0, 0, 1, 1], [], []>} : vector<8x128xbf16>, vector<128x128xbf16>, vector<8x128xf32> -> vector<8x128xf32>
    %c0_62 = arith.constant 0 : index
    %c0_63 = arith.constant 0 : index
    %78 = vector.load %arg3[%c0_62, %c0_63] : memref<1x128xf32, #tpu.memory_space<vmem>>, vector<1x128xf32>
    %79 = vector.broadcast %78 : vector<1x128xf32> to vector<8x128xf32>
    %80 = arith.addf %77, %79 : vector<8x128xf32>
    %c0_64 = arith.constant 0 : index
    %c0_65 = arith.constant 0 : index
    %81 = vector.load %arg4[%c0_64, %c0_65] : memref<8x128xf32, #tpu.memory_space<vmem>>, vector<8x128xf32>
    tpu.vector_store %arg4[%c0_64, %c0_65], %80 {strides = array<i32>} : memref<8x128xf32, #tpu.memory_space<vmem>>, vector<8x128xf32>,
    return
  }
}

</mosaic_0001>

<llo_original>
// kernel: rnn_forward.1
$region0: #{rnn_forward.1}
  #allocation0 [shape = 'u32[]', space=smem, size = 0x4, offset = 0x4, fixed_abs, tag = 'smem constant byte address 0x4 - core index']
  #allocation1 [shape = 'u32[144,128]{1,0:T(1,128)}', space=vmem, size = 0x12000, scoped, tag = 'internal scratch']
  #allocation2 [shape = 'f32[8,128]{1,0:T(8,128)}', space=vmem, size = 0x1000, scoped, tag = 'scratch operand']
  #allocation3 [shape = 's32[8]{0}', space=sflag, size = 0x20, scoped, tag = 'scratch operand']
  #allocation8 [shape = 's32[]', space=sflag, size = 0x4, offset = 0, fixed_abs, tag = 'sflag constant byte address 0x0 - dummy sync flag']
  #allocation9 [shape = 's32[]', space=sflag, size = 0x4, offset = 0, fixed_abs, tag = 'sflag constant byte address 0x0 - dummy sync flag']
  #allocation10 [shape = 'u32[]', space=smem, size = 0x4, offset = 0x44, fixed_abs, tag = 'smem constant byte address 0x44 - assertion arg 0']
  #allocation11 [shape = 'u32[]', space=smem, size = 0x4, offset = 0x48, fixed_abs, tag = 'smem constant byte address 0x48 - assertion arg 1']
  #allocation12 [shape = 's32[]', space=sflag, size = 0x4, offset = 0, fixed_abs, tag = 'sflag constant byte address 0x0 - dummy sync flag']
  #allocation13 [shape = 's32[]', space=sflag, size = 0x4, offset = 0, fixed_abs, tag = 'sflag constant byte address 0x0 - dummy sync flag']
  #allocation14 [shape = 's32[]', space=sflag, size = 0x4, offset = 0, fixed_abs, tag = 'sflag constant byte address 0x0 - dummy sync flag']
  #allocation15 [shape = 's32[]', space=sflag, size = 0x4, offset = 0, fixed_abs, tag = 'sflag constant byte address 0x0 - dummy sync flag']
  #allocation16 [shape = 's32[]', space=sflag, size = 0x4, offset = 0, fixed_abs, tag = 'sflag constant byte address 0x0 - dummy sync flag']
  #allocation17 [shape = 's32[]', space=sflag, size = 0x4, offset = 0, fixed_abs, tag = 'sflag constant byte address 0x0 - dummy sync flag']
  #allocation18 [shape = 's32[]', space=sflag, size = 0x4, offset = 0, fixed_abs, tag = 'sflag constant byte address 0x0 - dummy sync flag']
  #allocation19 [shape = 's32[]', space=sflag, size = 0x4, offset = 0, fixed_abs, tag = 'sflag constant byte address 0x0 - dummy sync flag']
  #allocation20 [shape = 's32[]', space=sflag, size = 0x4, offset = 0, fixed_abs, tag = 'sflag constant byte address 0x0 - dummy sync flag']
  #allocation21 [shape = 's32[]', space=sflag, size = 0x4, offset = 0, fixed_abs, tag = 'sflag constant byte address 0x0 - dummy sync flag']
  #allocation22 [shape = 's32[]', space=sflag, size = 0x4, offset = 0, fixed_abs, tag = 'sflag constant byte address 0x0 - dummy sync flag']
  #allocation23 [shape = 's32[]', space=sflag, size = 0x4, offset = 0, fixed_abs, tag = 'sflag constant byte address 0x0 - dummy sync flag']
  #allocation24 [shape = 's32[]', space=sflag, size = 0x4, offset = 0, fixed_abs, tag = 'sflag constant byte address 0x0 - dummy sync flag']
  #allocation25 [shape = 's32[]', space=sflag, size = 0x4, offset = 0, fixed_abs, tag = 'sflag constant byte address 0x0 - dummy sync flag']
  %s0 = inlined_call_operand.vmem [shape: s32[8], index: 0, kind: input, shape index: {}]
  %s1 = inlined_call_operand.hbm [shape: f32[32,128], index: 1, kind: input, shape index: {}]
  %s2 = inlined_call_operand.hbm [shape: bf16[128,128], index: 2, kind: input, shape index: {}]
  %s3 = inlined_call_operand.vmem [shape: f32[1,128], index: 3, kind: input, shape index: {}]
  %s4 = inlined_call_operand.vmem [shape: f32[8,128], index: 4, kind: output, shape index: {0}]
  %s5 = inlined_call_operand.vmem [shape: f32[8,128], index: 5, kind: output, shape index: {1}]
  %6 = xla_tuple %s4, %s5
  %s7 = sld [smem:[#allocation0]]
  $region70: #{rnn_forward.1} parent=0
    _
  %s9 = ssub.s32 1, %s7
  %s10 = scalar_select 0, %s9, %s7
  $region1: #{rnn_forward.1} parent=0
    #allocation4 [shape = 'u8[512]{0}', space=smem, size = 0x200, scoped, tag = 'input window, operand 0, single buffered']
    #allocation5 [shape = 's32[1]{0}', space=sflag, size = 0x4, scoped, tag = 'scoped memory for rnn_forward.1']
    #allocation6 [shape = 's32[1]{0}', space=sflag, size = 0x4, scoped, tag = 'scoped memory for rnn_forward.1']
    #allocation7 [shape = 'u8[32768]{0}', space=vmem, size = 0x8000, scoped, tag = 'input window, operand 2, single buffered']
    %11 = vsyncpa [#allocation6], 0
    %12 = vsyncpa [#allocation5], 0
    // Predicated region
    $region2: #{rnn_forward.1} parent=1 // pred_check
      _
    $region3: #{rnn_forward.1} parent=1 // pred_check_branch
      %14 = sbr.rel (0) target = $region5
    $region4: #{rnn_forward.1} parent=1 // pred_region
      %s16 = ssub.s32 16, 16
      %17 = vsyncadd [#allocation6], %s16
      %s19 = sshll.u32 %s0, 4
      %s20 = int_to_ptr.vmem [resolvable:$true] %s19
      %22 = dma.vmem_to_smem %s20, 16, [#allocation4], [#allocation6]
    $region5: #{rnn_forward.1} parent=1 // pred_fallthru
      _
    // Predicated region
    $region6: #{rnn_forward.1} parent=1 // pred_check
      _
    $region7: #{rnn_forward.1} parent=1 // pred_check_branch
      %24 = sbr.rel (0) target = $region9
    $region8: #{rnn_forward.1} parent=1 // pred_region
      %s26 = ssub.s32 1024, 1024
      %27 = vsyncadd [#allocation5], %s26
      %s28 = sshll.u32 [#allocation7], 4
      %s29 = int_to_ptr.vmem [resolvable:$true] %s28
      %34 = dma.hbm_to_vmem [thread:$0]  %s2, 1024, %s29, [#allocation5], 64, 64, 4
    $region9: #{rnn_forward.1} parent=1 // pred_fallthru
      _
    // Predicated region
    $region10: #{rnn_forward.1} parent=1 // pred_check
      _
    $region11: #{rnn_forward.1} parent=1 // pred_check_branch
      %36 = sbr.rel (0) target = $region13
    $region12: #{rnn_forward.1} parent=1 // pred_region
      _
    $region13: #{rnn_forward.1} parent=1 // pred_fallthru
      _
    // Predicated region
    $region14: #{rnn_forward.1} parent=1 // pred_check
      _
    $region15: #{rnn_forward.1} parent=1 // pred_check_branch
      %38 = sbr.rel (0) target = $region17
    $region16: #{rnn_forward.1} parent=1 // pred_region
      %39 = dma.done [#allocation6], 16
    $region17: #{rnn_forward.1} parent=1 // pred_fallthru
      _
    // Predicated region
    $region18: #{rnn_forward.1} parent=1 // pred_check
      _
    $region19: #{rnn_forward.1} parent=1 // pred_check_branch
      %41 = sbr.rel (0) target = $region21
    $region20: #{rnn_forward.1} parent=1 // pred_region
      %42 = dma.done [#allocation5], 1024
    $region21: #{rnn_forward.1} parent=1 // pred_fallthru
      _
    %43 = sfence
    %s45 = sld [smem:[#allocation4]]
    %s46 = sld [smem:[#allocation4 + $0x1]]
    %s47 = sld [smem:[#allocation4 + $0x2]]
    %s48 = sld [smem:[#allocation4 + $0x3]]
    %s49 = sld [smem:[#allocation4 + $0x4]]
    %s50 = sld [smem:[#allocation4 + $0x5]]
    %s51 = sld [smem:[#allocation4 + $0x6]]
    %s52 = sld [smem:[#allocation4 + $0x7]]
    %s53 = smul.addr %s45, 16
    %s54 = scalar_lea.hbm %s1, %s53
    // Predicated region
    $region22: #{rnn_forward.1} parent=1 // pred_check
      _
    $region23: #{rnn_forward.1} parent=1 // pred_check_branch
      %56 = sbr.rel target = $region25
    $region24: #{rnn_forward.1} parent=1 // pred_region
      %57 = sst [smem:[#allocation10]] [#allocation9]
      %58 = sst [smem:[#allocation11]] [#allocation8]
    $region25: #{rnn_forward.1} parent=1 // pred_fallthru
      _
    %60 = shalt.err (0)
    %s62 = sshll.u32 [#allocation2], 4
    %s63 = int_to_ptr.vmem [resolvable:$true] %s62
    %65 = dma.hbm_to_vmem [thread:$0]  %s54, 16, %s63, [#allocation3]
    %s66 = smul.addr %s46, 16
    %s67 = scalar_lea.hbm %s1, %s66
    %s68 = scalar_lea.vmem [#allocation2], 1
    %s69 = scalar_lea.sflag [#allocation3], 1
    // Predicated region
    $region26: #{rnn_forward.1} parent=1 // pred_check
      _
    $region27: #{rnn_forward.1} parent=1 // pred_check_branch
      %71 = sbr.rel target = $region29
    $region28: #{rnn_forward.1} parent=1 // pred_region
      %72 = sst [smem:[#allocation10]] [#allocation13]
      %73 = sst [smem:[#allocation11]] [#allocation12]
    $region29: #{rnn_forward.1} parent=1 // pred_fallthru
      _
    %75 = shalt.err (0)
    %s77 = sshll.u32 %s68, 4
    %s78 = int_to_ptr.vmem [resolvable:$true] %s77
    %80 = dma.hbm_to_vmem [thread:$0]  %s67, 16, %s78, %s69
    %s81 = smul.addr %s47, 16
    %s82 = scalar_lea.hbm %s1, %s81
    %s83 = scalar_lea.vmem [#allocation2], 2
    %s84 = scalar_lea.sflag [#allocation3], 2
    // Predicated region
    $region30: #{rnn_forward.1} parent=1 // pred_check
      _
    $region31: #{rnn_forward.1} parent=1 // pred_check_branch
      %86 = sbr.rel target = $region33
    $region32: #{rnn_forward.1} parent=1 // pred_region
      %87 = sst [smem:[#allocation10]] [#allocation15]
      %88 = sst [smem:[#allocation11]] [#allocation14]
    $region33: #{rnn_forward.1} parent=1 // pred_fallthru
      _
    %90 = shalt.err (0)
    %s92 = sshll.u32 %s83, 4
    %s93 = int_to_ptr.vmem [resolvable:$true] %s92
    %95 = dma.hbm_to_vmem [thread:$0]  %s82, 16, %s93, %s84
    %s96 = smul.addr %s48, 16
    %s97 = scalar_lea.hbm %s1, %s96
    %s98 = scalar_lea.vmem [#allocation2], 3
    %s99 = scalar_lea.sflag [#allocation3], 3
    // Predicated region
    $region34: #{rnn_forward.1} parent=1 // pred_check
      _
    $region35: #{rnn_forward.1} parent=1 // pred_check_branch
      %101 = sbr.rel target = $region37
    $region36: #{rnn_forward.1} parent=1 // pred_region
      %102 = sst [smem:[#allocation10]] [#allocation17]
      %103 = sst [smem:[#allocation11]] [#allocation16]
    $region37: #{rnn_forward.1} parent=1 // pred_fallthru
      _
    %105 = shalt.err (0)
    %s107 = sshll.u32 %s98, 4
    %s108 = int_to_ptr.vmem [resolvable:$true] %s107
    %110 = dma.hbm_to_vmem [thread:$0]  %s97, 16, %s108, %s99
    %s111 = smul.addr %s49, 16
    %s112 = scalar_lea.hbm %s1, %s111
    %s113 = scalar_lea.vmem [#allocation2], 4
    %s114 = scalar_lea.sflag [#allocation3], 4
    // Predicated region
    $region38: #{rnn_forward.1} parent=1 // pred_check
      _
    $region39: #{rnn_forward.1} parent=1 // pred_check_branch
      %116 = sbr.rel target = $region41
    $region40: #{rnn_forward.1} parent=1 // pred_region
      %117 = sst [smem:[#allocation10]] [#allocation19]
      %118 = sst [smem:[#allocation11]] [#allocation18]
    $region41: #{rnn_forward.1} parent=1 // pred_fallthru
      _
    %120 = shalt.err (0)
    %s122 = sshll.u32 %s113, 4
    %s123 = int_to_ptr.vmem [resolvable:$true] %s122
    %125 = dma.hbm_to_vmem [thread:$0]  %s112, 16, %s123, %s114
    %s126 = smul.addr %s50, 16
    %s127 = scalar_lea.hbm %s1, %s126
    %s128 = scalar_lea.vmem [#allocation2], 5
    %s129 = scalar_lea.sflag [#allocation3], 5
    // Predicated region
    $region42: #{rnn_forward.1} parent=1 // pred_check
      _
    $region43: #{rnn_forward.1} parent=1 // pred_check_branch
      %131 = sbr.rel target = $region45
    $region44: #{rnn_forward.1} parent=1 // pred_region
      %132 = sst [smem:[#allocation10]] [#allocation21]
      %133 = sst [smem:[#allocation11]] [#allocation20]
    $region45: #{rnn_forward.1} parent=1 // pred_fallthru
      _
    %135 = shalt.err (0)
    %s137 = sshll.u32 %s128, 4
    %s138 = int_to_ptr.vmem [resolvable:$true] %s137
    %140 = dma.hbm_to_vmem [thread:$0]  %s127, 16, %s138, %s129
    %s141 = smul.addr %s51, 16
    %s142 = scalar_lea.hbm %s1, %s141
    %s143 = scalar_lea.vmem [#allocation2], 6
    %s144 = scalar_lea.sflag [#allocation3], 6
    // Predicated region
    $region46: #{rnn_forward.1} parent=1 // pred_check
      _
    $region47: #{rnn_forward.1} parent=1 // pred_check_branch
      %146 = sbr.rel target = $region49
    $region48: #{rnn_forward.1} parent=1 // pred_region
      %147 = sst [smem:[#allocation10]] [#allocation23]
      %148 = sst [smem:[#allocation11]] [#allocation22]
    $region49: #{rnn_forward.1} parent=1 // pred_fallthru
      _
    %150 = shalt.err (0)
    %s152 = sshll.u32 %s143, 4
    %s153 = int_to_ptr.vmem [resolvable:$true] %s152
    %155 = dma.hbm_to_vmem [thread:$0]  %s142, 16, %s153, %s144
    %s156 = smul.addr %s52, 16
    %s157 = scalar_lea.hbm %s1, %s156
    %s158 = scalar_lea.vmem [#allocation2], 7
    %s159 = scalar_lea.sflag [#allocation3], 7
    // Predicated region
    $region50: #{rnn_forward.1} parent=1 // pred_check
      _
    $region51: #{rnn_forward.1} parent=1 // pred_check_branch
      %161 = sbr.rel target = $region53
    $region52: #{rnn_forward.1} parent=1 // pred_region
      %162 = sst [smem:[#allocation10]] [#allocation25]
      %163 = sst [smem:[#allocation11]] [#allocation24]
    $region53: #{rnn_forward.1} parent=1 // pred_fallthru
      _
    %165 = shalt.err (0)
    %s167 = sshll.u32 %s158, 4
    %s168 = int_to_ptr.vmem [resolvable:$true] %s167
    %170 = dma.hbm_to_vmem [thread:$0]  %s157, 16, %s168, %s159
    %s171 = smul.u32 1, 1
    %s172 = sshll.u32 %s171, 4
    %173 = dma.done [#allocation3], %s172
    %s174 = sshll.u32 %s171, 4
    %175 = dma.done %s69, %s174
    %s176 = sshll.u32 %s171, 4
    %177 = dma.done %s84, %s176
    %s178 = sshll.u32 %s171, 4
    %179 = dma.done %s99, %s178
    %s180 = sshll.u32 %s171, 4
    %181 = dma.done %s114, %s180
    %s182 = sshll.u32 %s171, 4
    %183 = dma.done %s129, %s182
    %s184 = sshll.u32 %s171, 4
    %185 = dma.done %s144, %s184
    %s186 = sshll.u32 %s171, 4
    %187 = dma.done %s159, %s186
    %v188 = vld [vmem:[#allocation2] sm:$0xff]
    %v189 = vtanh.pop %v188
    %190 = vst [vmem:[%s5] sm:$0xff] %v189
    %v191 = vpack.c.bf16 %v189, %v189
    %v192 = vld [vmem:[#allocation7] sm:$0xf]
    %v193 = vld [vmem:[#allocation7 + $0x4] sm:$0xf]
    %v194 = vld [vmem:[#allocation7 + $0x8] sm:$0xf]
    %v195 = vld [vmem:[#allocation7 + $0xc] sm:$0xf]
    %v196 = vld [vmem:[#allocation7 + $0x10] sm:$0xf]
    %v197 = vld [vmem:[#allocation7 + $0x14] sm:$0xf]
    %v198 = vld [vmem:[#allocation7 + $0x18] sm:$0xf]
    %v199 = vld [vmem:[#allocation7 + $0x1c] sm:$0xf]
    %v200 = vld [vmem:[#allocation7 + $0x20] sm:$0xf]
    %v201 = vld [vmem:[#allocation7 + $0x24] sm:$0xf]
    %v202 = vld [vmem:[#allocation7 + $0x28] sm:$0xf]
    %v203 = vld [vmem:[#allocation7 + $0x2c] sm:$0xf]
    %v204 = vld [vmem:[#allocation7 + $0x30] sm:$0xf]
    %v205 = vld [vmem:[#allocation7 + $0x34] sm:$0xf]
    %v206 = vld [vmem:[#allocation7 + $0x38] sm:$0xf]
    %v207 = vld [vmem:[#allocation7 + $0x3c] sm:$0xf]
    %v208 = vld [vmem:[%s3] sm:$0x1]
    %v210 = vlaneseq
    %v211 = vshrl.u32 %v210, 7
    %v212 = vsub.s32 0, %v211
    %v213 = vrot.slane %v208, %v212
    %v231 = vunpack.c.l.b16 %v192
    %v232 = vunpack.c.l.b16 %v193
    %v233 = vunpack.c.l.b16 %v194
    %v234 = vunpack.c.l.b16 %v195
    %v235 = vunpack.c.l.b16 %v196
    %v236 = vunpack.c.l.b16 %v197
    %v237 = vunpack.c.l.b16 %v198
    %v238 = vunpack.c.l.b16 %v199
    %v239 = vunpack.c.l.b16 %v200
    %v240 = vunpack.c.l.b16 %v201
    %v241 = vunpack.c.l.b16 %v202
    %v242 = vunpack.c.l.b16 %v203
    %v243 = vunpack.c.l.b16 %v204
    %v244 = vunpack.c.l.b16 %v205
    %v245 = vunpack.c.l.b16 %v206
    %v246 = vunpack.c.l.b16 %v207
    %v247 = vpack.c.b16 %v232, %v231
    %v248 = vpack.c.b16 %v234, %v233
    %v249 = vpack.c.b16 %v236, %v235
    %v250 = vpack.c.b16 %v238, %v237
    %v251 = vpack.c.b16 %v240, %v239
    %v252 = vpack.c.b16 %v242, %v241
    %v253 = vpack.c.b16 %v244, %v243
    %v254 = vpack.c.b16 %v246, %v245
    %263 = vmatprep.subr.bf16.mxu0 0
    %264 = vmatpush1.bf16.msra.mxu0 %v254
    %265 = vmatprep.subr.bf16.mxu0 0
    %266 = vmatpush1.bf16.msra.mxu0 %v253
    %267 = vmatprep.subr.bf16.mxu0 0
    %268 = vmatpush1.bf16.msra.mxu0 %v252
    %269 = vmatprep.subr.bf16.mxu0 0
    %270 = vmatpush1.bf16.msra.mxu0 %v251
    %271 = vmatprep.subr.bf16.mxu0 0
    %272 = vmatpush1.bf16.msra.mxu0 %v250
    %273 = vmatprep.subr.bf16.mxu0 0
    %274 = vmatpush1.bf16.msra.mxu0 %v249
    %275 = vmatprep.subr.bf16.mxu0 0
    %276 = vmatpush1.bf16.msra.mxu0 %v248
    %277 = vmatprep.subr.bf16.mxu0 0
    %278 = vmatpush1.bf16.msra.mxu0 %v247
    %279 = vmatprep.subr.bf16.mxu0 0
    %280 = vmatpush2.bf16.msra.mxu0 0
    %281 = vmatprep.subr.bf16.mxu0 0
    %282 = vmatpush2.bf16.msra.mxu0 0
    %283 = vmatprep.subr.bf16.mxu0 0
    %284 = vmatpush2.bf16.msra.mxu0 0
    %285 = vmatprep.subr.bf16.mxu0 0
    %286 = vmatpush2.bf16.msra.mxu0 0
    %287 = vmatprep.subr.bf16.mxu0 0
    %288 = vmatpush2.bf16.msra.mxu0 0
    %289 = vmatprep.subr.bf16.mxu0 0
    %290 = vmatpush2.bf16.msra.mxu0 0
    %291 = vmatprep.subr.bf16.mxu0 0
    %292 = vmatpush2.bf16.msra.mxu0 0
    %293 = vmatprep.subr.bf16.mxu0 0
    %294 = vmatpush2.bf16.msra.mxu0 0
    %295 = vmatprep.mubr.bf16.mxu0 0
    %296 = vmatmul.mubr.bf16.gmra.mxu0 %v191
    %v297 = vpop.f32.mrf.mxu0
    %v298 = vadd.f32 %v213, %v297
    %v299 = vpop.f32.mrf.mxu0
    %v300 = vpop.f32.mrf.mxu0
    %v301 = vpop.f32.mrf.mxu0
    %302 = vdwg.mxu0
    %303 = vst [vmem:[%s4] sm:$0xff] %v298
    // Predicated region
    $region54: #{rnn_forward.1} parent=1 // pred_check
      _
    $region55: #{rnn_forward.1} parent=1 // pred_check_branch
      %305 = sbr.rel (0) target = $region57
    $region56: #{rnn_forward.1} parent=1 // pred_region
      _
    $region57: #{rnn_forward.1} parent=1 // pred_fallthru
      _
    // Predicated region
    $region58: #{rnn_forward.1} parent=1 // pred_check
      _
    $region59: #{rnn_forward.1} parent=1 // pred_check_branch
      %307 = sbr.rel (0) target = $region61
    $region60: #{rnn_forward.1} parent=1 // pred_region
      _
    $region61: #{rnn_forward.1} parent=1 // pred_fallthru
      _
    // Predicated region
    $region62: #{rnn_forward.1} parent=1 // pred_check
      _
    $region63: #{rnn_forward.1} parent=1 // pred_check_branch
      %309 = sbr.rel (0) target = $region65
    $region64: #{rnn_forward.1} parent=1 // pred_region
      _
    $region65: #{rnn_forward.1} parent=1 // pred_fallthru
      _
    // Predicated region
    $region66: #{rnn_forward.1} parent=1 // pred_check
      _
    $region67: #{rnn_forward.1} parent=1 // pred_check_branch
      %311 = sbr.rel (0) target = $region69
    $region68: #{rnn_forward.1} parent=1 // pred_region
      _
    $region69: #{rnn_forward.1} parent=1 // pred_fallthru
      _
    %312 = vsyncpa [#allocation5], 1
    %313 = vsyncpa [#allocation6], 1
  %314 = vsyncmov [#allocation3]
  %s315 = vpop.sfrf %314
  %p316 = scmp.eq.s32.totalorder %s315, 0
  %p317 = pneg %p316
  %319 = shalt.err (%p317)
  %s320 = scalar_lea.sflag [#allocation3], 1
  %321 = vsyncmov %s320
  %s322 = vpop.sfrf %321
  %p323 = scmp.eq.s32.totalorder %s322, 0
  %p324 = pneg %p323
  %326 = shalt.err (%p324)
  %s327 = scalar_lea.sflag [#allocation3], 2
  %328 = vsyncmov %s327
  %s329 = vpop.sfrf %328
  %p330 = scmp.eq.s32.totalorder %s329, 0
  %p331 = pneg %p330
  %333 = shalt.err (%p331)
  %s334 = scalar_lea.sflag [#allocation3], 3
  %335 = vsyncmov %s334
  %s336 = vpop.sfrf %335
  %p337 = scmp.eq.s32.totalorder %s336, 0
  %p338 = pneg %p337
  %340 = shalt.err (%p338)
  %s341 = scalar_lea.sflag [#allocation3], 4
  %342 = vsyncmov %s341
  %s343 = vpop.sfrf %342
  %p344 = scmp.eq.s32.totalorder %s343, 0
  %p345 = pneg %p344
  %347 = shalt.err (%p345)
  %s348 = scalar_lea.sflag [#allocation3], 5
  %349 = vsyncmov %s348
  %s350 = vpop.sfrf %349
  %p351 = scmp.eq.s32.totalorder %s350, 0
  %p352 = pneg %p351
  %354 = shalt.err (%p352)
  %s355 = scalar_lea.sflag [#allocation3], 6
  %356 = vsyncmov %s355
  %s357 = vpop.sfrf %356
  %p358 = scmp.eq.s32.totalorder %s357, 0
  %p359 = pneg %p358
  %361 = shalt.err (%p359)
  %s362 = scalar_lea.sflag [#allocation3], 7
  %363 = vsyncmov %s362
  %s364 = vpop.sfrf %363
  %p365 = scmp.eq.s32.totalorder %s364, 0
  %p366 = pneg %p365
  %368 = shalt.err (%p366)

</llo_original>
